<compile_context>
chip_gen: v7x
topology: tpu7x:2x2x1
jax: 0.10.0
libtpu: 0.0.40
codegen_flags: <defaults>
</compile_context>

<pallas_src>
import numpy as np
import jax
import jax.numpy as jnp
from jax.experimental import pallas as pl
from jax.experimental.pallas import tpu as pltpu

EPS = 1e-5


# --------------------------------------------------------------------------
# device-derived tiling / VMEM budget
# --------------------------------------------------------------------------
def _tpu_vmem_capacity():
    try:
        return int(pltpu.get_tpu_info().vmem_capacity_bytes)
    except Exception:
        return 64 << 20          # conservative fallback (v7x-sized)


_VMEM_CAP = _tpu_vmem_capacity()
_VMEM_LIMIT = min(int(_VMEM_CAP * 3 // 4), 100 << 20)   # scoped-VMEM request
_TILE_BUDGET = _VMEM_LIMIT // 2                          # double-buffered WS

_CPARAMS = pltpu.CompilerParams(
    dimension_semantics=("parallel",),
    vmem_limit_bytes=_VMEM_LIMIT,
)


def _round_up(v, m):
    return ((v + m - 1) // m) * m


def _dense_tile(n_rows, cin, cp):
    # phase-2 working set per row (double buffered): x row + output row
    usable = max(_TILE_BUDGET - 2 * cin * cp * 4, 1 << 20)
    per_row = 2 * 4 * (cin + cp)
    t = max(8, (usable // per_row) // 8 * 8)
    t = min(t, 2048)
    return min(t, max(_round_up(n_rows, 8), 8))


def _grouped_tile(m_rows, ns, cp):
    # per M-row, double buffered: zg (bf16) + dp (lane-padded to 128) +
    # hmax/hmin outputs (f32)
    per_row = 2 * (ns * cp * 2 + ns * 128 * 4 + 2 * cp * 4)
    t = max(8, (_TILE_BUDGET // per_row) // 8 * 8)
    t = min(t, 1024)
    return min(t, max(_round_up(m_rows, 8), 8))


def _pad_axis(a, size, axis):
    pad = size - a.shape[axis]
    if pad <= 0:
        return a
    widths = [(0, 0)] * a.ndim
    widths[axis] = (0, pad)
    return jnp.pad(a, widths)


def _pad_last(a, to):
    return _pad_axis(a, to, a.ndim - 1)


def _bn_scale_shift(s, ss, count, gamma_p, beta_p):
    # fused BN affine from single-pass sum / sum-of-squares (tiny, pure JAX)
    mean = s / count
    var = jnp.maximum(ss / count - mean * mean, 0.0)
    inv_std = jax.lax.rsqrt(var + EPS)
    scale = gamma_p * inv_std
    shift = beta_p - mean * scale
    return scale, shift


# --------------------------------------------------------------------------
# Pallas kernels
# --------------------------------------------------------------------------
def _matmul_kernel(x_ref, wt_ref, o_ref):
    # z = x @ Wx^T for the strided path (pre-gather feature matmul), bf16 out.
    o_ref[...] = jnp.dot(
        x_ref[...], wt_ref[...], preferred_element_type=jnp.float32
    ).astype(o_ref.dtype)


def _dense_stats_kernel(x_ref, wt_ref, psum_ref, pssq_ref):
    # dense phase 1: per-tile partial sums of h = x @ Wx (h not materialized).
    h = jnp.dot(x_ref[...], wt_ref[...], preferred_element_type=jnp.float32)
    cp = h.shape[1]
    s = jnp.sum(h, axis=0, keepdims=True)
    ss = jnp.sum(h * h, axis=0, keepdims=True)
    # sublane-broadcast so the output block is a clean (8, Cp) tile
    psum_ref[...] = jnp.broadcast_to(s, (8, cp))
    pssq_ref[...] = jnp.broadcast_to(ss, (8, cp))


def _dense_apply_kernel(x_ref, wt_ref, scale_ref, shift_ref, o_ref):
    # dense phase 2: recompute h (cheap K=Cin matmul) fused with BN + ReLU.
    h = jnp.dot(x_ref[...], wt_ref[...], preferred_element_type=jnp.float32)
    o_ref[...] = jnp.maximum(
        h * scale_ref[...] + shift_ref[...], 0.0
    ).astype(o_ref.dtype)


def _grouped_stats_kernel(zg_ref, dp_ref, wpt_ref,
                          hmax_ref, hmin_ref, psum_ref, pssq_ref):
    # strided phase 1: h_j = z[nbr_j] + (p[nbr_j]-new_p) @ Wp per neighbour;
    # emit per-row running max AND min over nsample plus per-tile BN partial
    # sums.  Max/min accumulate through the output VMEM refs (no vreg blowup).
    ns = zg_ref.shape[0]
    cp = zg_ref.shape[2]
    wp = wpt_ref[...]

    h = zg_ref[0].astype(jnp.float32) + jnp.dot(
        dp_ref[0], wp, preferred_element_type=jnp.float32)
    hmax_ref[...] = h
    hmin_ref[...] = h
    s = jnp.sum(h, axis=0, keepdims=True)
    ss = jnp.sum(h * h, axis=0, keepdims=True)
    for j in range(1, ns):          # ns is small (8-16): fully unrolled
        h = zg_ref[j].astype(jnp.float32) + jnp.dot(
            dp_ref[j], wp, preferred_element_type=jnp.float32)
        hmax_ref[...] = jnp.maximum(hmax_ref[...], h)
        hmin_ref[...] = jnp.minimum(hmin_ref[...], h)
        s = s + jnp.sum(h, axis=0, keepdims=True)
        ss = ss + jnp.sum(h * h, axis=0, keepdims=True)
    psum_ref[...] = jnp.broadcast_to(s, (8, cp))
    pssq_ref[...] = jnp.broadcast_to(ss, (8, cp))


def _grouped_apply_kernel(hmax_ref, hmin_ref, scale_ref, shift_ref, o_ref):
    # strided phase 2: max(affine(h)) == affine(max h) for scale>=0 else
    # affine(min h); ReLU commutes with max.  Never touches zg/dp again.
    scale = scale_ref[...]
    sel = jnp.where(scale >= 0.0, hmax_ref[...], hmin_ref[...])
    o_ref[...] = jnp.maximum(
        sel * scale + shift_ref[...], 0.0
    ).astype(o_ref.dtype)


# --------------------------------------------------------------------------
# pallas_call wrappers (lane-dense Cp = round_up(Cout, 128), all axes parallel)
# --------------------------------------------------------------------------
def _call_matmul(x, wt, tile):
    n, cin = x.shape
    cp = wt.shape[1]
    return pl.pallas_call(
        _matmul_kernel,
        out_shape=jax.ShapeDtypeStruct((n, cp), jnp.bfloat16),
        grid=(n // tile,),
        in_specs=[pl.BlockSpec((tile, cin), lambda i: (i, 0)),
                  pl.BlockSpec((cin, cp), lambda i: (0, 0))],
        out_specs=pl.BlockSpec((tile, cp), lambda i: (i, 0)),
        compiler_params=_CPARAMS,
    )(x, wt)


def _call_dense_stats(x, wt, tile):
    n, cin = x.shape
    cp = wt.shape[1]
    nt = n // tile
    return pl.pallas_call(
        _dense_stats_kernel,
        out_shape=(jax.ShapeDtypeStruct((nt * 8, cp), jnp.float32),
                   jax.ShapeDtypeStruct((nt * 8, cp), jnp.float32)),
        grid=(nt,),
        in_specs=[pl.BlockSpec((tile, cin), lambda i: (i, 0)),
                  pl.BlockSpec((cin, cp), lambda i: (0, 0))],
        out_specs=(pl.BlockSpec((8, cp), lambda i: (i, 0)),
                   pl.BlockSpec((8, cp), lambda i: (i, 0))),
        compiler_params=_CPARAMS,
    )(x, wt)


def _call_dense_apply(x, wt, scale, shift, tile):
    n, cin = x.shape
    cp = wt.shape[1]
    return pl.pallas_call(
        _dense_apply_kernel,
        out_shape=jax.ShapeDtypeStruct((n, cp), jnp.float32),
        grid=(n // tile,),
        in_specs=[pl.BlockSpec((tile, cin), lambda i: (i, 0)),
                  pl.BlockSpec((cin, cp), lambda i: (0, 0)),
                  pl.BlockSpec((1, cp), lambda i: (0, 0)),
                  pl.BlockSpec((1, cp), lambda i: (0, 0))],
        out_specs=pl.BlockSpec((tile, cp), lambda i: (i, 0)),
        compiler_params=_CPARAMS,
    )(x, wt, scale, shift)


def _call_grouped_stats(zg, dp, wpt, tile):
    ns, m, cp = zg.shape
    nt = m // tile
    return pl.pallas_call(
        _grouped_stats_kernel,
        out_shape=(jax.ShapeDtypeStruct((m, cp), jnp.float32),      # hmax
                   jax.ShapeDtypeStruct((m, cp), jnp.float32),      # hmin
                   jax.ShapeDtypeStruct((nt * 8, cp), jnp.float32),  # psum
                   jax.ShapeDtypeStruct((nt * 8, cp), jnp.float32)),  # pssq
        grid=(nt,),
        in_specs=[pl.BlockSpec((ns, tile, cp), lambda i: (0, i, 0)),
                  pl.BlockSpec((ns, tile, 3), lambda i: (0, i, 0)),
                  pl.BlockSpec((3, cp), lambda i: (0, 0))],
        out_specs=(pl.BlockSpec((tile, cp), lambda i: (i, 0)),
                   pl.BlockSpec((tile, cp), lambda i: (i, 0)),
                   pl.BlockSpec((8, cp), lambda i: (i, 0)),
                   pl.BlockSpec((8, cp), lambda i: (i, 0))),
        compiler_params=_CPARAMS,
    )(zg, dp, wpt)


def _call_grouped_apply(hmax, hmin, scale, shift, tile):
    m, cp = hmax.shape
    return pl.pallas_call(
        _grouped_apply_kernel,
        out_shape=jax.ShapeDtypeStruct((m, cp), jnp.float32),
        grid=(m // tile,),
        in_specs=[pl.BlockSpec((tile, cp), lambda i: (i, 0)),
                  pl.BlockSpec((tile, cp), lambda i: (i, 0)),
                  pl.BlockSpec((1, cp), lambda i: (0, 0)),
                  pl.BlockSpec((1, cp), lambda i: (0, 0))],
        out_specs=pl.BlockSpec((tile, cp), lambda i: (i, 0)),
        compiler_params=_CPARAMS,
    )(hmax, hmin, scale, shift)


# --------------------------------------------------------------------------
# Glue: pointops.furthestsampling / kNN grouping equivalents
# --------------------------------------------------------------------------
def _furthest_point_sampling(p_np, offsets, new_offsets):
    # TODO(synk): sequential data-dependent argmax loop has no clean Pallas
    # equivalent; done on host (NumPy), matching per-segment FPS of pointops.
    p_np = np.asarray(p_np, dtype=np.float64)
    idx_all = []
    start, n_start = 0, 0
    for b in range(len(offsets)):
        end, n_end = int(offsets[b]), int(new_offsets[b])
        pts = p_np[start:end]
        n_sel = n_end - n_start
        sel = np.zeros(n_sel, dtype=np.int32)
        dist = np.full(pts.shape[0], 1e10)
        cur = 0
        sel[0] = start + cur
        for s in range(1, n_sel):
            d = np.sum((pts - pts[cur]) ** 2, axis=1)
            dist = np.minimum(dist, d)
            cur = int(np.argmax(dist))
            sel[s] = start + cur
        idx_all.append(sel)
        start, n_start = end, n_end
    return np.concatenate(idx_all)


def _knn_indices(nsample, p, new_p, o, n_o):
    # kNN within each batch segment; segments with < nsample points repeat the
    # nearest valid neighbour (matches pointops' padding behaviour).
    # TODO(synk): dense (M, N) distances; for large N this should become a
    # tiled Pallas kernel with scalar-prefetched segment offsets.
    n = p.shape[0]
    m = new_p.shape[0]
    seg_p = jnp.searchsorted(o, jnp.arange(n), side="right")
    seg_np = jnp.searchsorted(n_o, jnp.arange(m), side="right")
    d2 = jnp.sum((new_p[:, None, :] - p[None, :, :]) ** 2, axis=-1)     # (M, N)
    d2 = jnp.where(seg_np[:, None] != seg_p[None, :], jnp.inf, d2)
    neg, idx = jax.lax.top_k(-d2, nsample)                              # (M, ns)
    idx = jnp.where(jnp.isfinite(neg), idx, idx[:, :1])
    return idx.astype(jnp.int32)


# --------------------------------------------------------------------------
# TransitionDownBlock
# --------------------------------------------------------------------------
class TransitionDownBlockPallas:
    def __init__(self, in_planes, out_planes, stride=1, nsample=16, key=None):
        self.stride, self.nsample = stride, nsample
        self.in_planes, self.out_planes = in_planes, out_planes
        self.cp = _round_up(out_planes, 128)          # lane-dense channel dim
        key = jax.random.PRNGKey(0) if key is None else key
        k1, k2, k3 = jax.random.split(key, 3)
        lin_in = 3 + in_planes if stride != 1 else in_planes
        # deterministic synthetic parameters (nn.Linear(bias=False) + BN affine)
        self.w = jax.random.normal(k1, (out_planes, lin_in), jnp.float32) * 0.1
        self.gamma = 1.0 + 0.1 * jax.random.normal(k2, (out_planes,), jnp.float32)
        self.beta = 0.05 * jax.random.normal(k3, (out_planes,), jnp.float32)
        # hoisted transposed / lane-padded parameters (computed once)
        if stride != 1:
            self.wp_t = _pad_last(self.w[:, :3].T, self.cp)   # (3,   Cp)
            self.wx_t = _pad_last(self.w[:, 3:].T, self.cp)   # (Cin, Cp)
        else:
            self.wx_t = _pad_last(self.w.T, self.cp)          # (Cin, Cp)
        self.gamma_p = _pad_last(self.gamma.reshape(1, -1), self.cp)
        self.beta_p = _pad_last(self.beta.reshape(1, -1), self.cp)
        # stashed for external reference checks (breaks jit purity; debug only)
        self.last_group_idx = None

    def __call__(self, pxo):
        p, x, o = pxo
        n, cin = x.shape
        if self.stride != 1:
            # ---- sampling / grouping glue ---------------------------------
            o_host = np.asarray(jax.device_get(o)).astype(np.int64)
            n_o_list = [int(o_host[0]) // self.stride]
            count = n_o_list[0]
            for i in range(1, o_host.shape[0]):
                count += int(o_host[i] - o_host[i - 1]) // self.stride
                n_o_list.append(count)
            n_o = jnp.asarray(n_o_list, dtype=jnp.int32)
            idx_fps = _furthest_point_sampling(jax.device_get(p), o_host, n_o_list)
            n_p = p[jnp.asarray(idx_fps)]                               # (M, 3)
            idx = _knn_indices(self.nsample, p, n_p, o, n_o)            # (M, ns)
            self.last_group_idx = idx
            m, ns = n_p.shape[0], self.nsample

            # ---- tiling derived from device VMEM budget --------------------
            tile_n = _dense_tile(n, cin, self.cp)
            tile_m = _grouped_tile(m, ns, self.cp)
            n_pad = _round_up(n, tile_n)
            m_pad = _round_up(m, tile_m)
            if m_pad > m and n_pad == n:
                n_pad += tile_n    # guarantee an all-zero z row for pad gather

            # ---- z = x @ W_x once on the N un-gathered points (Pallas) -----
            x_pad = _pad_axis(x, n_pad, 0)
            z = _call_matmul(x_pad, self.wx_t, tile_n)       # (n_pad, Cp) bf16

            # ---- gather neighbours directly into the padded layout ---------
            # TODO(synk): row-gather of z could move inside the grouped kernel
            # via PrefetchScalarGridSpec once Cp*2 bytes/row justifies the DMAs.
            idx_t = idx.T                                                # (ns, M)
            dp = p[idx_t] - n_p[None, :, :]                              # (ns, M, 3)
            if m_pad > m:
                fill = jnp.full((ns, m_pad - m), n, dtype=jnp.int32)     # z[n]==0
                idx_t = jnp.concatenate([idx_t, fill], axis=1)
                dp = _pad_axis(dp, m_pad, 1)       # tiny; zero rows keep stats exact
            zg = z[idx_t]                                    # (ns, m_pad, Cp) bf16

            # ---- phase 1: stats + per-row max/min; phase 2: affine + ReLU --
            hmax, hmin, psum, pssq = _call_grouped_stats(zg, dp, self.wp_t, tile_m)
            s = jnp.sum(psum[::8], axis=0, keepdims=True)
            ss = jnp.sum(pssq[::8], axis=0, keepdims=True)
            scale, shift = _bn_scale_shift(s, ss, float(m * ns),
                                           self.gamma_p, self.beta_p)
            y = _call_grouped_apply(hmax, hmin, scale, shift, tile_m)
            return [n_p, y[:m, :self.out_planes], n_o]
        else:
            tile_n = _dense_tile(n, cin, self.cp)
            n_pad = _round_up(n, tile_n)
            x_pad = _pad_axis(x, n_pad, 0)
            psum, pssq = _call_dense_stats(x_pad, self.wx_t, tile_n)
            s = jnp.sum(psum[::8], axis=0, keepdims=True)
            ss = jnp.sum(pssq[::8], axis=0, keepdims=True)
            scale, shift = _bn_scale_shift(s, ss, float(n),
                                           self.gamma_p, self.beta_p)
            y = _call_dense_apply(x_pad, self.wx_t, scale, shift, tile_n)
            return [p, y[:n, :self.out_planes], o]


# --------------------------------------------------------------------------
# pure-JAX references (training-mode BN, biased variance)
# --------------------------------------------------------------------------
def _reference_stride1(x, w, gamma, beta):
    h = jnp.dot(x, w.T, precision=jax.lax.Precision.HIGHEST)
    mean = jnp.mean(h, axis=0)
    var = jnp.mean((h - mean) ** 2, axis=0)
    return jnp.maximum((h - mean) * jax.lax.rsqrt(var + EPS) * gamma + beta, 0.0)


def _reference_strided(p, x, n_p, idx, w, gamma, beta):
    grouped = jnp.concatenate([p[idx] - n_p[:, None, :], x[idx]], axis=-1)
    m, ns, din = grouped.shape
    h = jnp.dot(grouped.reshape(m * ns, din), w.T,
                precision=jax.lax.Precision.HIGHEST)
    mean = jnp.mean(h, axis=0)
    var = jnp.mean((h - mean) ** 2, axis=0)
    y = jnp.maximum((h - mean) * jax.lax.rsqrt(var + EPS) * gamma + beta, 0.0)
    return jnp.max(y.reshape(m, ns, -1), axis=1)


# --------------------------------------------------------------------------
if __name__ == "__main__":
    key = jax.random.PRNGKey(0)
    kp, kx, kw = jax.random.split(key, 3)

    N, C_IN, C_OUT = 64, 16, 32
    p = jax.random.uniform(kp, (N, 3), jnp.float32)       # point coordinates
    x = jax.random.normal(kx, (N, C_IN), jnp.float32)     # point features
    o = jnp.asarray([32, 64], dtype=jnp.int32)             # batch offsets

    # stride != 1: FPS + kNN group -> (pre-gather matmul, stats+max/min, apply)
    block_down = TransitionDownBlockPallas(C_IN, C_OUT, stride=4, nsample=8, key=kw)
    n_p, y_down, n_o = block_down([p, x, o])
    jax.block_until_ready(y_down)
    assert n_p.shape == (16, 3) and y_down.shape == (16, C_OUT)
    ref_down = _reference_strided(p, x, n_p, block_down.last_group_idx,
                                  block_down.w, block_down.gamma, block_down.beta)
    np.testing.assert_allclose(np.asarray(y_down), np.asarray(ref_down),
                               atol=3e-2, rtol=3e-2)

    # stride == 1: stats pass + fused recompute/BN/ReLU pass
    block_same = TransitionDownBlockPallas(C_IN, C_OUT, stride=1, key=kw)
    _, y_same, _ = block_same([p, x, o])
    jax.block_until_ready(y_same)
    assert y_same.shape == (N, C_OUT)
    ref_same = _reference_stride1(x, block_same.w, block_same.gamma, block_same.beta)
    np.testing.assert_allclose(np.asarray(y_same), np.asarray(ref_same),
                               atol=3e-2, rtol=3e-2)

    print("KERNEL_OK")
</pallas_src>

<mosaic_0001>
module attributes {stable_mosaic.version = 11 : i64} {
  func.func @_matmul_kernel(%arg0: i32, %arg1: memref<64x16xf32, #tpu.memory_space<vmem>>, %arg2: memref<16x128xf32, #tpu.memory_space<vmem>>, %arg3: memref<64x128xbf16, #tpu.memory_space<vmem>>) attributes {dimension_semantics = [#tpu.dimension_semantics<parallel>], iteration_bounds = array<i64: 1>, scalar_prefetch = 0 : i64, scratch_operands = 0 : i64, tpu.core_type = #tpu.core_type<tc>, window_params = [{transform_indices = @transform_0, window_bounds = array<i64: 64, 16>}, {pipeline_mode = #tpu.pipeline_mode<synchronous>, transform_indices = @transform_1, window_bounds = array<i64: 16, 128>}, {transform_indices = @transform_2, window_bounds = array<i64: 64, 128>}]} {
    %c0 = arith.constant 0 : index
    %c0_0 = arith.constant 0 : index
    %0 = vector.load %arg1[%c0, %c0_0] : memref<64x16xf32, #tpu.memory_space<vmem>>, vector<64x16xf32>
    %c0_1 = arith.constant 0 : index
    %c0_2 = arith.constant 0 : index
    %1 = vector.load %arg2[%c0_1, %c0_2] : memref<16x128xf32, #tpu.memory_space<vmem>>, vector<16x128xf32>
    %cst = arith.constant dense<0.000000e+00> : vector<64x128xf32>
    %2 = tpu.matmul %0, %1, %cst {dimension_numbers = #tpu.dot_dimension_numbers<[1], [0], [0], [1], [0, 0, 1, 1], [], []>} : vector<64x16xf32>, vector<16x128xf32>, vector<64x128xf32> -> vector<64x128xf32>
    %3 = arith.truncf %2 : vector<64x128xf32> to vector<64x128xbf16>
    %c0_3 = arith.constant 0 : index
    %c0_4 = arith.constant 0 : index
    %4 = vector.load %arg3[%c0_3, %c0_4] : memref<64x128xbf16, #tpu.memory_space<vmem>>, vector<64x128xbf16>
    tpu.vector_store %arg3[%c0_3, %c0_4], %3 {strides = array<i32>} : memref<64x128xbf16, #tpu.memory_space<vmem>>, vector<64x128xbf16>,
    return
  }
  func.func @transform_0(%arg0: i32) -> (i32, i32) {
    %c0_i32 = arith.constant 0 : i32
    %c0_i32_0 = arith.constant 0 : i32
    return %arg0, %c0_i32 : i32, i32
  }
  func.func @transform_1(%arg0: i32) -> (i32, i32) {
    %c0_i32 = arith.constant 0 : i32
    %c0_i32_0 = arith.constant 0 : i32
    %c0_i32_1 = arith.constant 0 : i32
    return %c0_i32, %c0_i32_0 : i32, i32
  }
  func.func @transform_2(%arg0: i32) -> (i32, i32) {
    %c0_i32 = arith.constant 0 : i32
    %c0_i32_0 = arith.constant 0 : i32
    return %arg0, %c0_i32 : i32, i32
  }
}

</mosaic_0001>

<llo_original>
// kernel: tpu_custom_call.1
$region0: #{tpu_custom_call.1}
  #allocation0 [shape = 'u32[]', space=smem, size = 0x4, offset = 0x4, fixed_abs, tag = 'smem constant byte address 0x4 - core index']
  #allocation1 [shape = 'u32[144,128]{1,0:T(1,128)}', space=vmem, size = 0x12000, scoped, tag = 'internal scratch']
  %s0 = inlined_call_operand.vmem [shape: f32[64,16], index: 0, kind: input, shape index: {}]
  %s1 = inlined_call_operand.vmem [shape: f32[16,128], index: 1, kind: input, shape index: {}]
  %s2 = inlined_call_operand.hbm [shape: bf16[64,128], index: 2, kind: output, shape index: {}]
  %s3 = sld [smem:[#allocation0]]
  $region18: #{tpu_custom_call.1} parent=0
    _
  %s5 = ssub.s32 1, %s3
  %s6 = scalar_select 0, %s5, %s3
  $region1: #{tpu_custom_call.1} parent=0
    #allocation2 [shape = 'u8[16384]{0}', space=vmem, size = 0x4000, scoped, tag = 'output window, operand 0, single buffered']
    #allocation3 [shape = 's32[1]{0}', space=sflag, size = 0x4, scoped, tag = 'scoped memory for tpu_custom_call.1']
    %7 = vsyncpa [#allocation3], 0
    // Predicated region
    $region2: #{tpu_custom_call.1} parent=1 // pred_check
      _
    $region3: #{tpu_custom_call.1} parent=1 // pred_check_branch
      %9 = sbr.rel (0) target = $region5
    $region4: #{tpu_custom_call.1} parent=1 // pred_region
      _
    $region5: #{tpu_custom_call.1} parent=1 // pred_fallthru
      _
    // Predicated region
    $region6: #{tpu_custom_call.1} parent=1 // pred_check
      _
    $region7: #{tpu_custom_call.1} parent=1 // pred_check_branch
      %11 = sbr.rel (0) target = $region9
    $region8: #{tpu_custom_call.1} parent=1 // pred_region
      _
    $region9: #{tpu_custom_call.1} parent=1 // pred_fallthru
      _
    %v12 = vld [vmem:[%s0] sm:$0xff]
    %v13 = vld [vmem:[%s0 + $0x8] sm:$0xff]
    %v14 = vld [vmem:[%s0 + $0x10] sm:$0xff]
    %v15 = vld [vmem:[%s0 + $0x18] sm:$0xff]
    %v16 = vld [vmem:[%s0 + $0x20] sm:$0xff]
    %v17 = vld [vmem:[%s0 + $0x28] sm:$0xff]
    %v18 = vld [vmem:[%s0 + $0x30] sm:$0xff]
    %v19 = vld [vmem:[%s0 + $0x38] sm:$0xff]
    %v20 = vld [vmem:[%s1] sm:$0xff]
    %v21 = vld [vmem:[%s1 + $0x8] sm:$0xff]
    %vm22 = vcmask 130048
    %v24 = vsel %vm22, %v12, 0
    %v27 = vsel %vm22, %v13, 0
    %v30 = vsel %vm22, %v14, 0
    %v33 = vsel %vm22, %v15, 0
    %v36 = vsel %vm22, %v16, 0
    %v39 = vsel %vm22, %v17, 0
    %v42 = vsel %vm22, %v18, 0
    %v45 = vsel %vm22, %v19, 0
    %47 = vmatprep.subr.mxu0 0.0
    %48 = vmatpush1.msra.mxu0 %v20
    %49 = vmatprep.subr.mxu0 0.0
    %50 = vmatpush1.msra.mxu0 %v21
    %51 = vmatprep.subr.mxu0 0.0
    %52 = vmatpush1.msra.mxu0 0.0
    %53 = vmatprep.subr.mxu0 0.0
    %54 = vmatpush1.msra.mxu0 0.0
    %55 = vmatprep.subr.mxu0 0.0
    %56 = vmatpush1.msra.mxu0 0.0
    %57 = vmatprep.subr.mxu0 0.0
    %58 = vmatpush1.msra.mxu0 0.0
    %59 = vmatprep.subr.mxu0 0.0
    %60 = vmatpush1.msra.mxu0 0.0
    %61 = vmatprep.subr.mxu0 0.0
    %62 = vmatpush1.msra.mxu0 0.0
    %63 = vmatprep.subr.mxu0 0.0
    %64 = vmatpush1.msra.mxu0 0.0
    %65 = vmatprep.subr.mxu0 0.0
    %66 = vmatpush1.msra.mxu0 0.0
    %67 = vmatprep.subr.mxu0 0.0
    %68 = vmatpush1.msra.mxu0 0.0
    %69 = vmatprep.subr.mxu0 0.0
    %70 = vmatpush1.msra.mxu0 0.0
    %71 = vmatprep.subr.mxu0 0.0
    %72 = vmatpush1.msra.mxu0 0.0
    %73 = vmatprep.subr.mxu0 0.0
    %74 = vmatpush1.msra.mxu0 0.0
    %75 = vmatprep.subr.mxu0 0.0
    %76 = vmatpush1.msra.mxu0 0.0
    %77 = vmatprep.subr.mxu0 0.0
    %78 = vmatpush1.msra.mxu0 0.0
    %79 = vmatprep.subr.mxu0 0.0
    %80 = vmatpush1.msra.mxu0 0.0
    %81 = vmatprep.subr.mxu0 0.0
    %82 = vmatpush1.msra.mxu0 0.0
    %83 = vmatprep.subr.mxu0 0.0
    %84 = vmatpush1.msra.mxu0 0.0
    %85 = vmatprep.subr.mxu0 0.0
    %86 = vmatpush1.msra.mxu0 0.0
    %87 = vmatprep.subr.mxu0 0.0
    %88 = vmatpush1.msra.mxu0 0.0
    %89 = vmatprep.subr.mxu0 0.0
    %90 = vmatpush1.msra.mxu0 0.0
    %91 = vmatprep.subr.mxu0 0.0
    %92 = vmatpush1.msra.mxu0 0.0
    %93 = vmatprep.subr.mxu0 0.0
    %94 = vmatpush1.msra.mxu0 0.0
    %95 = vmatprep.subr.mxu0 0.0
    %96 = vmatpush1.msra.mxu0 0.0
    %97 = vmatprep.subr.mxu0 0.0
    %98 = vmatpush1.msra.mxu0 0.0
    %99 = vmatprep.subr.mxu0 0.0
    %100 = vmatpush1.msra.mxu0 0.0
    %101 = vmatprep.subr.mxu0 0.0
    %102 = vmatpush1.msra.mxu0 0.0
    %103 = vmatprep.subr.mxu0 0.0
    %104 = vmatpush1.msra.mxu0 0.0
    %105 = vmatprep.subr.mxu0 0.0
    %106 = vmatpush1.msra.mxu0 0.0
    %107 = vmatprep.subr.mxu0 0.0
    %108 = vmatpush1.msra.mxu0 0.0
    %109 = vmatprep.subr.mxu0 0.0
    %110 = vmatpush1.msra.mxu0 0.0
    %111 = vmatprep.mubr.f32.mxu0 0.0
    %112 = vmatmul.mubr.f32.gmra.mrb[0].mxu0 %v24
    %v113 = vpop.f32.mrb[0].mxu0
    %v114 = vadd.f32 0.0, %v113
    %v115 = vpop.f32.mrb[0].mxu0
    %116 = vmatprep.mubr.f32.mxu0 0.0
    %117 = vmatmul.mubr.f32.gmra.mrb[0].mxu0 %v27
    %v118 = vpop.f32.mrb[0].mxu0
    %v119 = vadd.f32 0.0, %v118
    %v120 = vpop.f32.mrb[0].mxu0
    %121 = vmatprep.mubr.f32.mxu0 0.0
    %122 = vmatmul.mubr.f32.gmra.mrb[0].mxu0 %v30
    %v123 = vpop.f32.mrb[0].mxu0
    %v124 = vadd.f32 0.0, %v123
    %v125 = vpop.f32.mrb[0].mxu0
    %126 = vmatprep.mubr.f32.mxu0 0.0
    %127 = vmatmul.mubr.f32.gmra.mrb[0].mxu0 %v33
    %v128 = vpop.f32.mrb[0].mxu0
    %v129 = vadd.f32 0.0, %v128
    %v130 = vpop.f32.mrb[0].mxu0
    %131 = vmatprep.mubr.f32.mxu0 0.0
    %132 = vmatmul.mubr.f32.gmra.mrb[0].mxu0 %v36
    %v133 = vpop.f32.mrb[0].mxu0
    %v134 = vadd.f32 0.0, %v133
    %v135 = vpop.f32.mrb[0].mxu0
    %136 = vmatprep.mubr.f32.mxu0 0.0
    %137 = vmatmul.mubr.f32.gmra.mrb[0].mxu0 %v39
    %v138 = vpop.f32.mrb[0].mxu0
    %v139 = vadd.f32 0.0, %v138
    %v140 = vpop.f32.mrb[0].mxu0
    %141 = vmatprep.mubr.f32.mxu0 0.0
    %142 = vmatmul.mubr.f32.gmra.mrb[0].mxu0 %v42
    %v143 = vpop.f32.mrb[0].mxu0
    %v144 = vadd.f32 0.0, %v143
    %v145 = vpop.f32.mrb[0].mxu0
    %146 = vmatprep.mubr.f32.mxu0 0.0
    %147 = vmatmul.mubr.f32.gmra.mrb[0].mxu0 %v45
    %v148 = vpop.f32.mrb[0].mxu0
    %v149 = vadd.f32 0.0, %v148
    %v150 = vpop.f32.mrb[0].mxu0
    %151 = vdwg.mxu0
    %v152 = vpack.c.bf16 %v119, %v114
    %v153 = vpack.c.bf16 %v129, %v124
    %v154 = vpack.c.bf16 %v139, %v134
    %v155 = vpack.c.bf16 %v149, %v144
    %v160 = vunpack.c.l.b16 %v152
    %v161 = vunpack.c.h.b16 %v152
    %v162 = vunpack.c.l.b16 %v153
    %v163 = vunpack.c.h.b16 %v153
    %v164 = vunpack.c.l.b16 %v154
    %v165 = vunpack.c.h.b16 %v154
    %v166 = vunpack.c.l.b16 %v155
    %v167 = vunpack.c.h.b16 %v155
    %v168 = vpack.c.b16 %v160, %v160
    %v169 = vpack.c.b16 %v161, %v161
    %v170 = vpack.c.b16 %v162, %v162
    %v171 = vpack.c.b16 %v163, %v163
    %v172 = vpack.c.b16 %v164, %v164
    %v173 = vpack.c.b16 %v165, %v165
    %v174 = vpack.c.b16 %v166, %v166
    %v175 = vpack.c.b16 %v167, %v167
    %184 = vst [vmem:[#allocation2] sm:$0xf] %v168
    %185 = vst [vmem:[#allocation2 + $0x4] sm:$0xf] %v169
    %186 = vst [vmem:[#allocation2 + $0x8] sm:$0xf] %v170
    %187 = vst [vmem:[#allocation2 + $0xc] sm:$0xf] %v171
    %188 = vst [vmem:[#allocation2 + $0x10] sm:$0xf] %v172
    %189 = vst [vmem:[#allocation2 + $0x14] sm:$0xf] %v173
    %190 = vst [vmem:[#allocation2 + $0x18] sm:$0xf] %v174
    %191 = vst [vmem:[#allocation2 + $0x1c] sm:$0xf] %v175
    // Predicated region
    $region10: #{tpu_custom_call.1} parent=1 // pred_check
      _
    $region11: #{tpu_custom_call.1} parent=1 // pred_check_branch
      %193 = sbr.rel (0) target = $region13
    $region12: #{tpu_custom_call.1} parent=1 // pred_region
      %s195 = ssub.s32 512, 512
      %196 = vsyncadd [#allocation3], %s195
      %s197 = sshll.u32 [#allocation2], 4
      %s198 = int_to_ptr.vmem [resolvable:$true] %s197
      %203 = dma.vmem_to_hbm [thread:$0]  %s198, 512, %s2, [#allocation3], 64, 64, 4
    $region13: #{tpu_custom_call.1} parent=1 // pred_fallthru
      _
    // Predicated region
    $region14: #{tpu_custom_call.1} parent=1 // pred_check
      _
    $region15: #{tpu_custom_call.1} parent=1 // pred_check_branch
      %205 = sbr.rel (0) target = $region17
    $region16: #{tpu_custom_call.1} parent=1 // pred_region
      %206 = dma.done [#allocation3], 512
    $region17: #{tpu_custom_call.1} parent=1 // pred_fallthru
      _
    %207 = vsyncpa [#allocation3], 1

</llo_original>
